<compile_context>
chip_gen: v5e
topology: v5e:2x2
jax: 0.10.0
libtpu: 0.0.40
codegen_flags: <defaults>
</compile_context>

<pallas_src>
import functools

import jax
import jax.numpy as jnp
from jax.experimental import pallas as pl
from jax.experimental.pallas import tpu as pltpu


def _device_params():
    """Returns (per-input tile byte budget, vmem_limit_bytes, tensorcores/device)."""
    kind = ""
    try:
        kind = jax.devices()[0].device_kind.lower()
    except Exception:
        pass
    if "v7" in kind:
        # v7x: 64 MiB VMEM per TC, ~3.2 TB/s HBM, 2 TensorCores per chip.
        return 8 << 20, 48 << 20, 2
    if "v6" in kind:
        # v6e: 128 MiB VMEM (32 MiB scoped default), ~1.4 TB/s HBM, 1 TC.
        return 8 << 20, 64 << 20, 1
    if "v5" in kind and ("lite" in kind or "v5e" in kind):
        # v5e: 128 MiB VMEM (16 MiB scoped default), ~0.8 TB/s HBM, 1 TC.
        return 4 << 20, 32 << 20, 1
    if "v4" in kind or "v5p" in kind:
        # Megacore chips: 2 TensorCores, conservative budget.
        return 4 << 20, 32 << 20, 2
    # Unknown: conservative.
    return 4 << 20, 32 << 20, 1


def _pick_block_rows(batch, dim, itemsize, budget_bytes):
    # Sublane packing multiple: 8 for f32, 16 for bf16, 32 for int8.
    mult = max(8, 8 * (4 // max(1, itemsize)))
    tb = budget_bytes // max(1, dim * itemsize)
    tb = max(mult, (tb // mult) * mult)
    if batch <= tb:
        return batch  # full extent is always a legal block shape
    return tb


def _inter_cos_kernel(f_ref, c_ref, o_ref, acc_ref, *, batch, block_rows,
                      tiles_per_split):
    i = pl.program_id(0)   # parallel split
    j = pl.program_id(1)   # tile within split

    @pl.when(j == 0)
    def _init():
        acc_ref[0] = jnp.float32(0.0)

    f = f_ref[...].astype(jnp.float32)            # [TB, D]
    c = c_ref[...].astype(jnp.float32)            # [TB, D]

    # Per-row reductions (exact f32 sums; kernel is HBM-bandwidth-bound).
    dot = jnp.sum(f * c, axis=1, keepdims=True)   # [TB, 1]
    f2 = jnp.sum(f * f, axis=1, keepdims=True)    # [TB, 1]
    c2 = jnp.sum(c * c, axis=1, keepdims=True)    # [TB, 1]
    # TODO(synk): if a v7x / bf16 bundle dump shows these three cross-lane
    # reductions saturating the XLU, offload them to the idle MXU via one
    # [f*c; f*f; c*c] @ ones((D, 128)) matmul and take lane 0.

    # Match PyTorch: dot / max(||f|| * ||c||, eps).  sqrt before multiplying
    # keeps rows with very large norms finite (f2 * c2 could overflow).
    eps = jnp.float32(1e-8)
    denom = jnp.maximum(jnp.sqrt(f2) * jnp.sqrt(c2), eps)
    cos = dot / denom                              # [TB, 1]

    # Global tile index; may point past the last real tile (clamped duplicate
    # produced by the rectangular split grid) -> fully masked below.
    g = i * tiles_per_split + j
    full = (g + 1) * block_rows <= batch

    @pl.when(full)
    def _full_tile():
        acc_ref[0] += jnp.sum(cos)

    @pl.when(jnp.logical_not(full))
    def _ragged_tile():
        row = g * block_rows + jax.lax.broadcasted_iota(jnp.int32, cos.shape, 0)
        acc_ref[0] += jnp.sum(jnp.where(row < batch, cos, 0.0))

    @pl.when(j == pl.num_programs(1) - 1)
    def _finalize():
        # Lane-dense per-split partial sum (one (8,128) block per split).
        o_ref[...] = jnp.full(o_ref.shape, acc_ref[0], o_ref.dtype)


def _inter_cos_pallas(feature, centroid, *, num_splits=None, block_rows=None):
    batch, dim = feature.shape
    itemsize = jnp.dtype(feature.dtype).itemsize
    budget, vmem_limit, dev_cores = _device_params()

    if block_rows is None:
        tb = _pick_block_rows(batch, dim, itemsize, budget)
    else:
        tb = min(block_rows, batch)

    total_tiles = pl.cdiv(batch, tb)
    if num_splits is None:
        num_splits = dev_cores
    num_splits = max(1, min(num_splits, total_tiles))
    tiles_per_split = pl.cdiv(total_tiles, num_splits)

    kernel = functools.partial(
        _inter_cos_kernel, batch=batch, block_rows=tb,
        tiles_per_split=tiles_per_split)

    def in_idx(i, j):
        # Clamp so the (rectangular) split grid never indexes past the last
        # real tile; duplicate tiles are fully masked in-kernel.
        return (jnp.minimum(i * tiles_per_split + j, total_tiles - 1), 0)

    out = pl.pallas_call(
        kernel,
        out_shape=jax.ShapeDtypeStruct((num_splits * 8, 128), jnp.float32),
        grid=(num_splits, tiles_per_split),
        in_specs=[
            pl.BlockSpec((tb, dim), in_idx),
            pl.BlockSpec((tb, dim), in_idx),
        ],
        out_specs=pl.BlockSpec((8, 128), lambda i, j: (i, 0)),
        scratch_shapes=[pltpu.SMEM((1,), jnp.float32)],
        compiler_params=pltpu.CompilerParams(
            dimension_semantics=("parallel", "arbitrary"),
            vmem_limit_bytes=vmem_limit,
        ),
        cost_estimate=pl.CostEstimate(
            flops=6 * batch * dim,
            transcendentals=2 * batch,
            bytes_accessed=2 * batch * dim * itemsize + num_splits * 8 * 128 * 4,
        ),
    )(feature, centroid)

    partials = out[::8, 0]                       # one partial sum(cos) per split
    return 1.0 + jnp.sum(partials) / jnp.float32(batch)


# Below this, a single XLA fusion beats kernel-launch + per-step overhead
# (and avoids lane-padding waste when D < 128).
_SMALL_INPUT_BYTES = 1 << 20


def inter_cosine_similarity(feature, centroid, *, force_pallas=False,
                            num_splits=None, block_rows=None):
    assert feature.shape == centroid.shape and feature.ndim == 2
    total_bytes = 2 * feature.size * jnp.dtype(feature.dtype).itemsize
    if not force_pallas and total_bytes < _SMALL_INPUT_BYTES:
        # TODO(synk): for large B with D < 128 a dense-lane repack (128//D rows
        # per lane-row) before the kernel would recover padded HBM bandwidth.
        return _reference(feature, centroid)
    return _inter_cos_pallas(feature, centroid, num_splits=num_splits,
                             block_rows=block_rows)


def _reference(feature, centroid):
    f = feature.astype(jnp.float32)
    c = centroid.astype(jnp.float32)
    dot = jnp.sum(f * c, axis=1)
    denom = jnp.maximum(
        jnp.linalg.norm(f, axis=1) * jnp.linalg.norm(c, axis=1), 1e-8
    )
    return jnp.mean(1.0 + dot / denom)


if __name__ == "__main__":
    key = jax.random.PRNGKey(0)
    k1, k2, k3, k4, k5, k6 = jax.random.split(key, 6)

    # Small shape consistent with the module (batch=8, hidden=32); force the
    # Pallas path so the kernel itself is exercised (single full-extent tile).
    f1 = jax.random.normal(k1, (8, 32), dtype=jnp.float32)
    c1 = jax.random.normal(k2, (8, 32), dtype=jnp.float32)
    out1 = inter_cosine_similarity(f1, c1, force_pallas=True)
    jax.block_until_ready(out1)
    ref1 = _reference(f1, c1)
    assert jnp.allclose(out1, ref1, atol=1e-4, rtol=1e-4), (out1, ref1)

    # Multi-tile + ragged last tile + forced 2-way parallel split + clamped
    # duplicate tile (9 tiles over a 2x5 grid).
    f2 = jax.random.normal(k3, (1040, 128), dtype=jnp.float32)
    c2 = jax.random.normal(k4, (1040, 128), dtype=jnp.float32)
    out2 = inter_cosine_similarity(f2, c2, force_pallas=True,
                                   num_splits=2, block_rows=128)
    jax.block_until_ready(out2)
    ref2 = _reference(f2, c2)
    assert jnp.allclose(out2, ref2, atol=1e-4, rtol=1e-4), (out2, ref2)

    # Larger shape on the fully automatic path (device-sized blocks / splits),
    # plus bf16 inputs (halved HBM traffic; kernel upcasts to f32 internally).
    f3 = jax.random.normal(k5, (4096, 512), dtype=jnp.float32)
    c3 = jax.random.normal(k6, (4096, 512), dtype=jnp.float32)
    out3 = inter_cosine_similarity(f3, c3)
    jax.block_until_ready(out3)
    ref3 = _reference(f3, c3)
    assert jnp.allclose(out3, ref3, atol=1e-4, rtol=1e-4), (out3, ref3)

    f4 = f3[:1040, :128].astype(jnp.bfloat16)
    c4 = c3[:1040, :128].astype(jnp.bfloat16)
    out4 = inter_cosine_similarity(f4, c4, force_pallas=True)
    jax.block_until_ready(out4)
    ref4 = _reference(f4, c4)
    assert jnp.allclose(out4, ref4, atol=2e-3, rtol=2e-3), (out4, ref4)

    print("KERNEL_OK")
</pallas_src>

<mosaic_0001>
module attributes {stable_mosaic.version = 11 : i64} {
  func.func @_inter_cos_kernel(%arg0: i32, %arg1: i32, %arg2: memref<8x32xf32, #tpu.memory_space<vmem>>, %arg3: memref<8x32xf32, #tpu.memory_space<vmem>>, %arg4: memref<8x128xf32, #tpu.memory_space<vmem>>, %arg5: memref<1xf32, #tpu.memory_space<smem>>) attributes {dimension_semantics = [#tpu.dimension_semantics<parallel>, #tpu.dimension_semantics<arbitrary>], iteration_bounds = array<i64: 1, 1>, scalar_prefetch = 0 : i64, scratch_operands = 1 : i64, tpu.core_type = #tpu.core_type<tc>, window_params = [{transform_indices = @transform_0, window_bounds = array<i64: 8, 32>}, {transform_indices = @transform_1, window_bounds = array<i64: 8, 32>}, {transform_indices = @transform_2, window_bounds = array<i64: 8, 128>}]} {
    %c0_i32 = arith.constant 0 : i32
    %0 = arith.cmpi eq, %arg1, %c0_i32 : i32
    %1 = arith.extui %0 : i1 to i32
    %c0_i32_0 = arith.constant 0 : i32
    %2 = arith.cmpi ne, %1, %c0_i32_0 : i32
    scf.if %2 {
      %cst_13 = arith.constant 0.000000e+00 : f32
      %c0_14 = arith.constant 0 : index
      %33 = memref.load %arg5[%c0_14] : memref<1xf32, #tpu.memory_space<smem>>
      memref.store %cst_13, %arg5[%c0_14] : memref<1xf32, #tpu.memory_space<smem>>
    } else {
    }
    %c0 = arith.constant 0 : index
    %c0_1 = arith.constant 0 : index
    %3 = vector.load %arg2[%c0, %c0_1] : memref<8x32xf32, #tpu.memory_space<vmem>>, vector<8x32xf32>
    %c0_2 = arith.constant 0 : index
    %c0_3 = arith.constant 0 : index
    %4 = vector.load %arg3[%c0_2, %c0_3] : memref<8x32xf32, #tpu.memory_space<vmem>>, vector<8x32xf32>
    %5 = arith.mulf %3, %4 : vector<8x32xf32>
    %cst = arith.constant dense<0.000000e+00> : vector<8xf32>
    %6 = vector.multi_reduction <add>, %5, %cst [1] : vector<8x32xf32> to vector<8xf32>
    %7 = vector.shape_cast %6 : vector<8xf32> to vector<8x1xf32>
    %8 = arith.mulf %3, %3 : vector<8x32xf32>
    %cst_4 = arith.constant dense<0.000000e+00> : vector<8xf32>
    %9 = vector.multi_reduction <add>, %8, %cst_4 [1] : vector<8x32xf32> to vector<8xf32>
    %10 = vector.shape_cast %9 : vector<8xf32> to vector<8x1xf32>
    %11 = arith.mulf %4, %4 : vector<8x32xf32>
    %cst_5 = arith.constant dense<0.000000e+00> : vector<8xf32>
    %12 = vector.multi_reduction <add>, %11, %cst_5 [1] : vector<8x32xf32> to vector<8xf32>
    %13 = vector.shape_cast %12 : vector<8xf32> to vector<8x1xf32>
    %14 = math.sqrt %10 : vector<8x1xf32>
    %15 = math.sqrt %13 : vector<8x1xf32>
    %16 = arith.mulf %14, %15 : vector<8x1xf32>
    %cst_6 = arith.constant 9.99999993E-9 : f32
    %17 = vector.broadcast %cst_6 : f32 to vector<8x1xf32>
    %18 = arith.maximumf %16, %17 : vector<8x1xf32>
    %19 = arith.divf %7, %18 : vector<8x1xf32>
    %c1_i32 = arith.constant 1 : i32
    %20 = arith.muli %arg0, %c1_i32 : i32
    %21 = arith.addi %20, %arg1 : i32
    %c1_i32_7 = arith.constant 1 : i32
    %22 = arith.addi %21, %c1_i32_7 : i32
    %c8_i32 = arith.constant 8 : i32
    %23 = arith.muli %22, %c8_i32 : i32
    %c8_i32_8 = arith.constant 8 : i32
    %24 = arith.cmpi sle, %23, %c8_i32_8 : i32
    %25 = arith.extui %24 : i1 to i32
    %c0_i32_9 = arith.constant 0 : i32
    %26 = arith.cmpi ne, %25, %c0_i32_9 : i32
    scf.if %26 {
      %c0_13 = arith.constant 0 : index
      %33 = memref.load %arg5[%c0_13] : memref<1xf32, #tpu.memory_space<smem>>
      %34 = vector.shape_cast %19 : vector<8x1xf32> to vector<1x8x1xf32>
      %cst_14 = arith.constant dense<0.000000e+00> : vector<1xf32>
      %35 = vector.multi_reduction <add>, %34, %cst_14 [1, 2] : vector<1x8x1xf32> to vector<1xf32>
      %36 = vector.shape_cast %35 : vector<1xf32> to vector<1x1x1xf32>
      %37 = vector.extract %36[0, 0, 0] : f32 from vector<1x1x1xf32>
      %38 = arith.addf %33, %37 : f32
      %c0_15 = arith.constant 0 : index
      %39 = memref.load %arg5[%c0_15] : memref<1xf32, #tpu.memory_space<smem>>
      memref.store %38, %arg5[%c0_15] : memref<1xf32, #tpu.memory_space<smem>>
    } else {
    }
    %true = arith.constant true
    %27 = arith.xori %24, %true : i1
    %28 = arith.extui %27 : i1 to i32
    %c0_i32_10 = arith.constant 0 : i32
    %29 = arith.cmpi ne, %28, %c0_i32_10 : i32
    scf.if %29 {
      %c8_i32_13 = arith.constant 8 : i32
      %33 = arith.muli %21, %c8_i32_13 : i32
      %34 = tpu.iota {dimensions = array<i32: 0>} : vector<8x1xi32>
      %35 = vector.broadcast %33 : i32 to vector<8x1xi32>
      %36 = arith.addi %35, %34 : vector<8x1xi32>
      %c0_14 = arith.constant 0 : index
      %37 = memref.load %arg5[%c0_14] : memref<1xf32, #tpu.memory_space<smem>>
      %c8_i32_15 = arith.constant 8 : i32
      %38 = vector.broadcast %c8_i32_15 : i32 to vector<8x1xi32>
      %39 = arith.cmpi slt, %36, %38 : vector<8x1xi32>
      %cst_16 = arith.constant 0.000000e+00 : f32
      %40 = vector.broadcast %cst_16 : f32 to vector<8x1xf32>
      %41 = arith.select %39, %19, %40 : vector<8x1xi1>, vector<8x1xf32>
      %42 = vector.shape_cast %41 : vector<8x1xf32> to vector<1x8x1xf32>
      %cst_17 = arith.constant dense<0.000000e+00> : vector<1xf32>
      %43 = vector.multi_reduction <add>, %42, %cst_17 [1, 2] : vector<1x8x1xf32> to vector<1xf32>
      %44 = vector.shape_cast %43 : vector<1xf32> to vector<1x1x1xf32>
      %45 = vector.extract %44[0, 0, 0] : f32 from vector<1x1x1xf32>
      %46 = arith.addf %37, %45 : f32
      %c0_18 = arith.constant 0 : index
      %47 = memref.load %arg5[%c0_18] : memref<1xf32, #tpu.memory_space<smem>>
      memref.store %46, %arg5[%c0_18] : memref<1xf32, #tpu.memory_space<smem>>
    } else {
    }
    %c0_i32_11 = arith.constant 0 : i32
    %30 = arith.cmpi eq, %arg1, %c0_i32_11 : i32
    %31 = arith.extui %30 : i1 to i32
    %c0_i32_12 = arith.constant 0 : i32
    %32 = arith.cmpi ne, %31, %c0_i32_12 : i32
    scf.if %32 {
      %c0_13 = arith.constant 0 : index
      %33 = memref.load %arg5[%c0_13] : memref<1xf32, #tpu.memory_space<smem>>
      %34 = vector.broadcast %33 : f32 to vector<8x128xf32>
      %c0_14 = arith.constant 0 : index
      %c0_15 = arith.constant 0 : index
      %35 = vector.load %arg4[%c0_14, %c0_15] : memref<8x128xf32, #tpu.memory_space<vmem>>, vector<8x128xf32>
      tpu.vector_store %arg4[%c0_14, %c0_15], %34 {strides = array<i32>} : memref<8x128xf32, #tpu.memory_space<vmem>>, vector<8x128xf32>,
    } else {
    }
    return
  }
  func.func @transform_0(%arg0: i32, %arg1: i32) -> (i32, i32) {
    %c1_i32 = arith.constant 1 : i32
    %0 = arith.muli %arg0, %c1_i32 : i32
    %1 = arith.addi %0, %arg1 : i32
    %c0_i32 = arith.constant 0 : i32
    %2 = arith.minsi %1, %c0_i32 : i32
    %c0_i32_0 = arith.constant 0 : i32
    %c0_i32_1 = arith.constant 0 : i32
    return %2, %c0_i32_0 : i32, i32
  }
  func.func @transform_1(%arg0: i32, %arg1: i32) -> (i32, i32) {
    %c1_i32 = arith.constant 1 : i32
    %0 = arith.muli %arg0, %c1_i32 : i32
    %1 = arith.addi %0, %arg1 : i32
    %c0_i32 = arith.constant 0 : i32
    %2 = arith.minsi %1, %c0_i32 : i32
    %c0_i32_0 = arith.constant 0 : i32
    %c0_i32_1 = arith.constant 0 : i32
    return %2, %c0_i32_0 : i32, i32
  }
  func.func @transform_2(%arg0: i32, %arg1: i32) -> (i32, i32) {
    %c0_i32 = arith.constant 0 : i32
    %c0_i32_0 = arith.constant 0 : i32
    return %arg0, %c0_i32 : i32, i32
  }
}

</mosaic_0001>

<llo_original>
// kernel: tpu_custom_call.1
$region0: #{tpu_custom_call.1}
  #allocation0 [shape = 'u32[]', space=smem, size = 0x4, offset = 0x4, fixed_abs, tag = 'smem constant byte address 0x4 - core index']
  #allocation1 [shape = 'u32[72,128]{1,0:T(1,128)}', space=vmem, size = 0x9000, scoped, tag = 'internal scratch']
  #allocation2 [shape = 'f32[1]{0:T(128)}', space=smem, size = 0x200, scoped, tag = 'scratch operand']
  %s0 = inlined_call_operand.hbm [shape: f32[8,32], index: 0, kind: input, shape index: {}]
  %s1 = inlined_call_operand.hbm [shape: f32[8,32], index: 1, kind: input, shape index: {}]
  %s2 = inlined_call_operand.hbm [shape: f32[8,128], index: 2, kind: output, shape index: {}]
  %s3 = sld [smem:[#allocation0]]
  $region42: #{tpu_custom_call.1} parent=0
    _
  %s5 = ssub.s32 1, %s3
  %s6 = scalar_select 0, %s5, %s3
  $region1: #{tpu_custom_call.1} parent=0
    #allocation3 [shape = 'u8[4096]{0}', space=vmem, size = 0x1000, scoped, tag = 'input window, operand 0, single buffered']
    #allocation4 [shape = 's32[1]{0}', space=sflag, size = 0x4, scoped, tag = 'scoped memory for tpu_custom_call.1']
    #allocation5 [shape = 's32[1]{0}', space=sflag, size = 0x4, scoped, tag = 'scoped memory for tpu_custom_call.1']
    #allocation6 [shape = 'u8[4096]{0}', space=vmem, size = 0x1000, scoped, tag = 'input window, operand 1, single buffered']
    #allocation7 [shape = 's32[1]{0}', space=sflag, size = 0x4, scoped, tag = 'scoped memory for tpu_custom_call.1']
    #allocation8 [shape = 'u8[4096]{0}', space=vmem, size = 0x1000, scoped, tag = 'output window, operand 0, single buffered']
    %7 = vsyncpa [#allocation4], 0
    %8 = vsyncpa [#allocation7], 0
    %9 = vsyncpa [#allocation5], 0
    // Predicated region
    $region2: #{tpu_custom_call.1} parent=1 // pred_check
      _
    $region3: #{tpu_custom_call.1} parent=1 // pred_check_branch
      %11 = sbr.rel (0) target = $region5
    $region4: #{tpu_custom_call.1} parent=1 // pred_region
      %s12 = sadd.s32 0, 0
      %p13 = scmp.lt.s32.totalorder %s12, 0
      %s14 = scalar_select %p13, %s12, 0
      %16 = vsyncadd [#allocation4], 0
      %s17 = smul.addr %s14, 8
      %s18 = scalar_lea.hbm %s0, %s17
      %s20 = sshll.u32 %s18, 4
      %s21 = int_to_ptr.hbm [resolvable:$true] %s20
      %s22 = sshll.u32 [#allocation3], 4
      %s23 = int_to_ptr.vmem [resolvable:$true] %s22
      %25 = dma.hbm_to_vmem [thread:$0]  %s21, 128, %s23, [#allocation4]
    $region5: #{tpu_custom_call.1} parent=1 // pred_fallthru
      _
    // Predicated region
    $region6: #{tpu_custom_call.1} parent=1 // pred_check
      _
    $region7: #{tpu_custom_call.1} parent=1 // pred_check_branch
      %27 = sbr.rel (0) target = $region9
    $region8: #{tpu_custom_call.1} parent=1 // pred_region
      %s28 = sadd.s32 0, 0
      %p29 = scmp.lt.s32.totalorder %s28, 0
      %s30 = scalar_select %p29, %s28, 0
      %32 = vsyncadd [#allocation7], 0
      %s33 = smul.addr %s30, 8
      %s34 = scalar_lea.hbm %s1, %s33
      %s36 = sshll.u32 %s34, 4
      %s37 = int_to_ptr.hbm [resolvable:$true] %s36
      %s38 = sshll.u32 [#allocation6], 4
      %s39 = int_to_ptr.vmem [resolvable:$true] %s38
      %41 = dma.hbm_to_vmem [thread:$0]  %s37, 128, %s39, [#allocation7]
    $region9: #{tpu_custom_call.1} parent=1 // pred_fallthru
      _
    // Predicated region
    $region10: #{tpu_custom_call.1} parent=1 // pred_check
      _
    $region11: #{tpu_custom_call.1} parent=1 // pred_check_branch
      %43 = sbr.rel (0) target = $region13
    $region12: #{tpu_custom_call.1} parent=1 // pred_region
      %45 = dma.done [#allocation4], 128
    $region13: #{tpu_custom_call.1} parent=1 // pred_fallthru
      _
    // Predicated region
    $region14: #{tpu_custom_call.1} parent=1 // pred_check
      _
    $region15: #{tpu_custom_call.1} parent=1 // pred_check_branch
      %47 = sbr.rel (0) target = $region17
    $region16: #{tpu_custom_call.1} parent=1 // pred_region
      %49 = dma.done [#allocation7], 128
    $region17: #{tpu_custom_call.1} parent=1 // pred_fallthru
      _
    %s50 = sadd.s32 0, 0
    %p51 = scmp.lt.s32.totalorder %s50, 0
    %s52 = scalar_select %p51, %s50, 0
    %s53 = sadd.s32 0, 0
    %p54 = scmp.lt.s32.totalorder %s53, 0
    %s55 = scalar_select %p54, %s53, 0
    %p56 = scmp.eq.s32.totalorder 0, 0
    // Predicated region
    $region18: #{tpu_custom_call.1} parent=1 // pred_check
      %p57 = pneg %p56
    $region19: #{tpu_custom_call.1} parent=1 // pred_check_branch
      %59 = sbr.rel (%p57) target = $region21
    $region20: #{tpu_custom_call.1} parent=1 // pred_region
      %s60 = scalar_lea.smem [#allocation2], 0
      %61 = sst [smem:[%s60]] 0.0
    $region21: #{tpu_custom_call.1} parent=1 // pred_fallthru
      _
    %v62 = vld [vmem:[#allocation3] sm:$0xff]
    %v63 = vld [vmem:[#allocation6] sm:$0xff]
    %v64 = vmul.f32 %v62, %v63
    %vm65 = vcmask 261120
    %v66 = vsel %vm65, %v64, 0.0
    %67 = vadd.xlane.f32.xlu0 %v66
    %v68 = vpop.xlane.xlu0 %67
    %v69 = vmul.f32 %v62, %v62
    %v70 = vsel %vm65, %v69, 0.0
    %71 = vadd.xlane.f32.xlu0 %v70
    %v72 = vpop.xlane.xlu0 %71
    %v73 = vmul.f32 %v63, %v63
    %v74 = vsel %vm65, %v73, 0.0
    %75 = vadd.xlane.f32.xlu0 %v74
    %v76 = vpop.xlane.xlu0 %75
    %v77 = vrsqrt.pop %v72
    %v78 = vmul.f32 %v77, %v72
    %v79 = vmul.f32 %v78, %v77
    %v80 = vmul.f32 0.5, %v79
    %v81 = vsub.f32 1.5, %v80
    %v82 = vmul.f32 %v77, %v81
    %v83 = vmul.f32 %v72, %v82
    %vm84 = vcmp.eq.f32.partialorder %v72, inf
    %v85 = vsel %vm84, %v72, %v83
    %vm86 = vcmp.eq.f32.partialorder %v72, 0.0
    %v87 = vand.u32 %v72, 2147483648
    %v88 = vsel %vm86, %v87, %v85
    %v89 = vrsqrt.pop %v76
    %v90 = vmul.f32 %v89, %v76
    %v91 = vmul.f32 %v90, %v89
    %v92 = vmul.f32 0.5, %v91
    %v93 = vsub.f32 1.5, %v92
    %v94 = vmul.f32 %v89, %v93
    %v95 = vmul.f32 %v76, %v94
    %vm96 = vcmp.eq.f32.partialorder %v76, inf
    %v97 = vsel %vm96, %v76, %v95
    %vm98 = vcmp.eq.f32.partialorder %v76, 0.0
    %v99 = vand.u32 %v76, 2147483648
    %v100 = vsel %vm98, %v99, %v97
    %v101 = vmul.f32 %v88, %v100
    %v102 = vmax.f32 %v101, 1e-08
    %v103 = vrcp.pop %v102
    %v104 = vmul.f32 %v102, %v103
    %v105 = vsub.f32 1.0, %v104
    %v106 = vmul.f32 %v103, %v105
    %v107 = vadd.f32 %v103, %v106
    %vm108 = vweird.f32 %v102
    %vm109 = vweird.f32 %v103
    %vm110 = vmor %vm108, %vm109
    %v111 = vsel %vm110, %v103, %v107
    %v112 = vand.u32 2147483647, %v102
    %vm113 = vcmp.eq.f32.partialorder %v112, 8.507059e+37
    %v114 = vand.u32 %v102, 2147483648
    %v115 = vor.u32 1.1754944e-38, %v114
    %v116 = vsel %vm113, %v115, %v111
    %v117 = vmul.f32 %v68, %v116
    %s118 = sadd.s32 0, 0
    %s119 = sadd.s32 %s118, 1
    %s120 = smul.u32 %s119, 8
    %p121 = scmp.le.s32.totalorder %s120, 8
    // Predicated region
    $region22: #{tpu_custom_call.1} parent=1 // pred_check
      %p122 = pneg %p121
    $region23: #{tpu_custom_call.1} parent=1 // pred_check_branch
      %124 = sbr.rel (%p122) target = $region25
    $region24: #{tpu_custom_call.1} parent=1 // pred_region
      %s125 = sld [smem:[#allocation2]]
      %vm126 = vcmask 7168
      %v127 = vsel %vm126, %v117, 0.0
      %128 = vadd.xlane.f32.xlu0 %v127
      %v129 = vpop.xlane.xlu0 %128
      %v130 = vrot.slane %v129, 4
      %v131 = vadd.f32 %v129, %v130
      %v132 = vrot.slane %v131, 2
      %v133 = vadd.f32 %v131, %v132
      %v134 = vrot.slane %v133, 1
      %v135 = vadd.f32 %v133, %v134
      %s136 = vtos %v135
      %s137 = sadd.f32 %s125, %s136
      %s138 = scalar_lea.smem [#allocation2], 0
      %139 = sst [smem:[%s138]] %s137
    $region25: #{tpu_custom_call.1} parent=1 // pred_fallthru
      _
    %p140 = scmp.gt.s32.totalorder %s120, 8
    // Predicated region
    $region26: #{tpu_custom_call.1} parent=1 // pred_check
      %p141 = pneg %p140
    $region27: #{tpu_custom_call.1} parent=1 // pred_check_branch
      %143 = sbr.rel (%p141) target = $region29
    $region28: #{tpu_custom_call.1} parent=1 // pred_region
      %s144 = smul.u32 %s118, 8
      %v145 = vlaneseq
      %v146 = vshrl.u32 %v145, 7
      %v147 = vstv %s144
      %v148 = vadd.s32 %v147, %v146
      %s149 = sld [smem:[#allocation2]]
      %vm150 = vcmp.lt.s32.totalorder %v148, 8
      %v151 = vsel %vm150, %v117, 0.0
      %vm152 = vcmask 7168
      %v153 = vsel %vm152, %v151, 0.0
      %154 = vadd.xlane.f32.xlu0 %v153
      %v155 = vpop.xlane.xlu0 %154
      %v156 = vrot.slane %v155, 4
      %v157 = vadd.f32 %v155, %v156
      %v158 = vrot.slane %v157, 2
      %v159 = vadd.f32 %v157, %v158
      %v160 = vrot.slane %v159, 1
      %v161 = vadd.f32 %v159, %v160
      %s162 = vtos %v161
      %s163 = sadd.f32 %s149, %s162
      %s164 = scalar_lea.smem [#allocation2], 0
      %165 = sst [smem:[%s164]] %s163
    $region29: #{tpu_custom_call.1} parent=1 // pred_fallthru
      _
    // Predicated region
    $region30: #{tpu_custom_call.1} parent=1 // pred_check
      %p166 = pneg %p56
    $region31: #{tpu_custom_call.1} parent=1 // pred_check_branch
      %168 = sbr.rel (%p166) target = $region33
    $region32: #{tpu_custom_call.1} parent=1 // pred_region
      %s169 = sld [smem:[#allocation2]]
      %v170 = vstv %s169
      %171 = vst [vmem:[#allocation8] sm:$0xff] %v170
    $region33: #{tpu_custom_call.1} parent=1 // pred_fallthru
      _
    // Predicated region
    $region34: #{tpu_custom_call.1} parent=1 // pred_check
      _
    $region35: #{tpu_custom_call.1} parent=1 // pred_check_branch
      %173 = sbr.rel (0) target = $region37
    $region36: #{tpu_custom_call.1} parent=1 // pred_region
      %175 = vsyncadd [#allocation5], 0
      %s177 = sshll.u32 [#allocation8], 4
      %s178 = int_to_ptr.vmem [resolvable:$true] %s177
      %s179 = sshll.u32 %s2, 4
      %s180 = int_to_ptr.hbm [resolvable:$true] %s179
      %182 = dma.vmem_to_hbm [thread:$0]  %s178, 128, %s180, [#allocation5]
    $region37: #{tpu_custom_call.1} parent=1 // pred_fallthru
      _
    // Predicated region
    $region38: #{tpu_custom_call.1} parent=1 // pred_check
      _
    $region39: #{tpu_custom_call.1} parent=1 // pred_check_branch
      %184 = sbr.rel (0) target = $region41
    $region40: #{tpu_custom_call.1} parent=1 // pred_region
      %186 = dma.done [#allocation5], 128
    $region41: #{tpu_custom_call.1} parent=1 // pred_fallthru
      _
    %187 = vsyncpa [#allocation4], 1
    %188 = vsyncpa [#allocation7], 1
    %189 = vsyncpa [#allocation5], 1

</llo_original>
